<compile_context>
chip_gen: v6e
topology: v6e:2x2x1
jax: 0.10.0
libtpu: 0.0.40
codegen_flags: <defaults>
</compile_context>

<pallas_src>
import functools

import jax
import jax.numpy as jnp
from jax.experimental import pallas as pl
from jax.experimental.pallas import tpu as pltpu

EPS = 1e-5  # PyTorch nn.LayerNorm default eps


def _round_up(n, m):
    return ((n + m - 1) // m) * m


def _cdiv(a, b):
    return -(-a // b)


def _silu(h):
    return h * jax.nn.sigmoid(h)


def _layer_norm_axis0(h):
    """LayerNorm(elementwise_affine=False) over the hidden axis (axis 0).

    One-pass statistics: E[h], E[h^2]; biased variance, matching PyTorch.
    h: (H, TB) f32, batch along lanes.
    """
    m1 = jnp.mean(h, axis=0, keepdims=True)
    m2 = jnp.mean(h * h, axis=0, keepdims=True)
    var = jnp.maximum(m2 - m1 * m1, 0.0)
    return (h - m1) * jax.lax.rsqrt(var + EPS)


def reward_net_kernel(f_ref, w1t_ref, b1_ref, w2t_ref, b2_ref, w3_ref, b3_ref,
                      o_ref):
    # Layer 1: (H, Kp) @ (Kp, TB) bf16 -> f32 accumulate, + bias.
    h = jnp.dot(w1t_ref[...], f_ref[...],
                preferred_element_type=jnp.float32) + b1_ref[...]
    h = _silu(_layer_norm_axis0(h))

    # Layer 2: (H, H) @ (H, TB) with bf16 operands, f32 accumulate.
    h = jnp.dot(w2t_ref[...], h.astype(jnp.bfloat16),
                preferred_element_type=jnp.float32) + b2_ref[...]
    h = _silu(_layer_norm_axis0(h))

    # Output head: VPU multiply + sublane reduction -> lane-dense (1, TB) row.
    r = jnp.sum(h * w3_ref[...], axis=0, keepdims=True) + b3_ref[0, 0]
    o_ref[...] = r.astype(o_ref.dtype)


def init_params(key, n_x, n_u, n_hidden=128):
    """PyTorch-style nn.Linear init (U[-1/sqrt(fan_in), 1/sqrt(fan_in)]).

    Weights are stored pre-transposed / pre-packed for the transposed kernel:
      w1t: (H, Kp) bf16  (Kp = round_up(n_x+n_u, 8), extra columns zero)
      w2t: (H, H)  bf16
      b1, b2, w3: (H, 1) f32        b3: (1, 1) f32 (SMEM scalar)
    """
    ks = jax.random.split(key, 6)

    def lin(kw, kb, fan_in, fan_out):
        bound = 1.0 / (fan_in ** 0.5)
        w = jax.random.uniform(kw, (fan_in, fan_out), jnp.float32, -bound, bound)
        b = jax.random.uniform(kb, (fan_out,), jnp.float32, -bound, bound)
        return w, b

    K = n_x + n_u
    Kp = _round_up(K, 8)
    w1, b1 = lin(ks[0], ks[1], K, n_hidden)
    w2, b2 = lin(ks[2], ks[3], n_hidden, n_hidden)
    w3, b3 = lin(ks[4], ks[5], n_hidden, 1)

    w1t = jnp.zeros((n_hidden, Kp), jnp.float32).at[:, :K].set(w1.T)
    return dict(
        w1t=w1t.astype(jnp.bfloat16),
        b1=b1.reshape(n_hidden, 1),
        w2t=w2.T.astype(jnp.bfloat16),
        b2=b2.reshape(n_hidden, 1),
        w3=w3.reshape(n_hidden, 1),
        b3=b3.reshape(1, 1),
    )


@functools.partial(jax.jit, static_argnames=("block_batch",))
def reward_net_forward(x, u, params, block_batch=256):
    """Fused RewardNet forward.  Returns (B, 1) f32.

    block_batch: target batch-tile size (sweep {128, 256, 512}; 128/256 on
    v5e, 256 default on v6e/v7x).
    """
    B, NX = x.shape
    NU = u.shape[1]
    K = NX + NU
    H, Kp = params["w1t"].shape

    # Load-balanced batch tiling.  Batch lives on the LANE axis, so multi-tile
    # grids need TB % 128 == 0; a single tile only needs sublane alignment.
    # Any B > block_batch produces >= 2 grid steps (v7x megacore occupancy).
    n_tiles = max(1, _cdiv(B, block_batch))
    if n_tiles == 1:
        TB = _round_up(B, 8)
    else:
        TB = _round_up(_cdiv(B, n_tiles), 128)
        n_tiles = _cdiv(B, TB)
    Bp = TB * n_tiles
    grid = (n_tiles,)

    # Pack f^T = concat([x, u], -1)^T, zero-padded to (Kp, Bp), bf16 (the only
    # per-step streamed input; bf16 halves its DMA and matches MXU operands).
    f = jnp.concatenate([x.astype(jnp.float32), u.astype(jnp.float32)], axis=-1)
    f = jnp.pad(f, ((0, Bp - B), (0, Kp - K)))
    fT = f.astype(jnp.bfloat16).T                      # (Kp, Bp)

    def const_spec(shape):
        # Constant block index across the batch grid -> weights stay resident
        # in VMEM, no per-step re-DMA.
        return pl.BlockSpec(shape, lambda i: (0, 0))

    out = pl.pallas_call(
        reward_net_kernel,
        out_shape=jax.ShapeDtypeStruct((1, Bp), jnp.float32),
        grid=grid,
        in_specs=[
            pl.BlockSpec((Kp, TB), lambda i: (0, i)),            # f^T
            const_spec((H, Kp)),                                 # w1^T (bf16)
            const_spec((H, 1)),                                  # b1
            const_spec((H, H)),                                  # w2^T (bf16)
            const_spec((H, 1)),                                  # b2
            const_spec((H, 1)),                                  # w3
            pl.BlockSpec(memory_space=pltpu.MemorySpace.SMEM),   # b3 scalar
        ],
        out_specs=pl.BlockSpec((1, TB), lambda i: (0, i)),       # lane-dense
        compiler_params=pltpu.CompilerParams(
            dimension_semantics=("parallel",)),
    )(fT, params["w1t"], params["b1"], params["w2t"], params["b2"],
      params["w3"], params["b3"])

    return out[0, :B][:, None]


def reward_net_ref(x, u, params):
    """Pure-JAX reference mirroring the kernel's math (bf16 MXU operands,
    f32 accumulation/LayerNorm).  Full-f32 PyTorch parity is within ~1e-2."""
    f = jnp.concatenate([x.astype(jnp.float32), u.astype(jnp.float32)], axis=-1)
    K = f.shape[1]
    f_q = f.astype(jnp.bfloat16).astype(jnp.float32)
    w1 = params["w1t"].astype(jnp.float32)[:, :K].T            # (K, H)
    w2 = params["w2t"].astype(jnp.float32).T                   # (H, H)

    def ln(h):
        mu = jnp.mean(h, axis=-1, keepdims=True)
        var = jnp.mean((h - mu) ** 2, axis=-1, keepdims=True)
        return (h - mu) * jax.lax.rsqrt(var + EPS)

    h = f_q @ w1 + params["b1"][:, 0]
    h = _silu(ln(h))
    h = h.astype(jnp.bfloat16).astype(jnp.float32) @ w2 + params["b2"][:, 0]
    h = _silu(ln(h))
    return h @ params["w3"] + params["b3"][0, 0]


if __name__ == "__main__":
    key = jax.random.PRNGKey(0)
    k_x, k_u, k_p = jax.random.split(key, 3)

    # Small shapes consistent with the module: n_x=(4,), n_u=(2,), hidden=128.
    B, NX, NU, H = 8, 4, 2, 128
    x = jax.random.normal(k_x, (B, NX), jnp.float32)
    u = jax.random.normal(k_u, (B, NU), jnp.float32)
    params = init_params(k_p, NX, NU, H)

    out = jax.block_until_ready(reward_net_forward(x, u, params))
    ref = reward_net_ref(x, u, params)

    assert out.shape == (B, 1), out.shape
    assert jnp.allclose(out, ref, atol=2e-3, rtol=2e-3), "mismatch vs reference"

    # TODO(synk): RewardNet.cost() (detach + negate) is autograd plumbing, not
    # kernel work; use -reward_net_forward(...) with lax.stop_gradient.
    print("KERNEL_OK")
</pallas_src>

<mosaic_0001>
module attributes {stable_mosaic.version = 11 : i64} {
  func.func @reward_net_kernel(%arg0: i32, %arg1: memref<8x8xbf16, #tpu.memory_space<vmem>>, %arg2: memref<128x8xbf16, #tpu.memory_space<vmem>>, %arg3: memref<128x1xf32, #tpu.memory_space<vmem>>, %arg4: memref<128x128xbf16, #tpu.memory_space<vmem>>, %arg5: memref<128x1xf32, #tpu.memory_space<vmem>>, %arg6: memref<128x1xf32, #tpu.memory_space<vmem>>, %arg7: memref<1x1xf32, #tpu.memory_space<smem>>, %arg8: memref<1x8xf32, #tpu.memory_space<vmem>>) attributes {dimension_semantics = [#tpu.dimension_semantics<parallel>], iteration_bounds = array<i64: 1>, scalar_prefetch = 0 : i64, scratch_operands = 0 : i64, tpu.core_type = #tpu.core_type<tc>, window_params = [{transform_indices = @transform_0, window_bounds = array<i64: 8, 8>}, {pipeline_mode = #tpu.pipeline_mode<synchronous>, transform_indices = @transform_1, window_bounds = array<i64: 128, 8>}, {pipeline_mode = #tpu.pipeline_mode<synchronous>, transform_indices = @transform_2, window_bounds = array<i64: 128, 1>}, {pipeline_mode = #tpu.pipeline_mode<synchronous>, transform_indices = @transform_3, window_bounds = array<i64: 128, 128>}, {pipeline_mode = #tpu.pipeline_mode<synchronous>, transform_indices = @transform_4, window_bounds = array<i64: 128, 1>}, {pipeline_mode = #tpu.pipeline_mode<synchronous>, transform_indices = @transform_5, window_bounds = array<i64: 128, 1>}, {transform_indices = @transform_6, window_bounds = array<i64: 1, 1>}, {transform_indices = @transform_7, window_bounds = array<i64: 1, 8>}]} {
    %c0 = arith.constant 0 : index
    %c0_0 = arith.constant 0 : index
    %0 = vector.load %arg2[%c0, %c0_0] : memref<128x8xbf16, #tpu.memory_space<vmem>>, vector<128x8xbf16>
    %c0_1 = arith.constant 0 : index
    %c0_2 = arith.constant 0 : index
    %1 = vector.load %arg1[%c0_1, %c0_2] : memref<8x8xbf16, #tpu.memory_space<vmem>>, vector<8x8xbf16>
    %cst = arith.constant dense<0.000000e+00> : vector<128x8xf32>
    %2 = tpu.matmul %0, %1, %cst {dimension_numbers = #tpu.dot_dimension_numbers<[1], [0], [0], [1], [0, 0, 1, 1], [], []>} : vector<128x8xbf16>, vector<8x8xbf16>, vector<128x8xf32> -> vector<128x8xf32>
    %c0_3 = arith.constant 0 : index
    %c0_4 = arith.constant 0 : index
    %3 = vector.load %arg3[%c0_3, %c0_4] : memref<128x1xf32, #tpu.memory_space<vmem>>, vector<128x1xf32>
    %4 = vector.broadcast %3 : vector<128x1xf32> to vector<128x8xf32>
    %5 = arith.addf %2, %4 : vector<128x8xf32>
    %cst_5 = arith.constant dense<0.000000e+00> : vector<8xf32>
    %6 = vector.multi_reduction <add>, %5, %cst_5 [0] : vector<128x8xf32> to vector<8xf32>
    %7 = vector.shape_cast %6 : vector<8xf32> to vector<1x8xf32>
    %cst_6 = arith.constant 1.280000e+02 : f32
    %8 = vector.broadcast %cst_6 : f32 to vector<1x8xf32>
    %9 = arith.divf %7, %8 : vector<1x8xf32>
    %10 = arith.mulf %5, %5 : vector<128x8xf32>
    %cst_7 = arith.constant dense<0.000000e+00> : vector<8xf32>
    %11 = vector.multi_reduction <add>, %10, %cst_7 [0] : vector<128x8xf32> to vector<8xf32>
    %12 = vector.shape_cast %11 : vector<8xf32> to vector<1x8xf32>
    %cst_8 = arith.constant 1.280000e+02 : f32
    %13 = vector.broadcast %cst_8 : f32 to vector<1x8xf32>
    %14 = arith.divf %12, %13 : vector<1x8xf32>
    %15 = arith.mulf %9, %9 : vector<1x8xf32>
    %16 = arith.subf %14, %15 : vector<1x8xf32>
    %cst_9 = arith.constant 0.000000e+00 : f32
    %17 = vector.broadcast %cst_9 : f32 to vector<1x8xf32>
    %18 = arith.maximumf %16, %17 : vector<1x8xf32>
    %19 = vector.broadcast %9 : vector<1x8xf32> to vector<128x8xf32>
    %20 = arith.subf %5, %19 : vector<128x8xf32>
    %cst_10 = arith.constant 9.99999974E-6 : f32
    %21 = vector.broadcast %cst_10 : f32 to vector<1x8xf32>
    %22 = arith.addf %18, %21 : vector<1x8xf32>
    %23 = math.rsqrt %22 : vector<1x8xf32>
    %24 = vector.broadcast %23 : vector<1x8xf32> to vector<128x8xf32>
    %25 = arith.mulf %20, %24 : vector<128x8xf32>
    %26 = arith.negf %25 : vector<128x8xf32>
    %27 = math.exp %26 : vector<128x8xf32>
    %cst_11 = arith.constant 1.000000e+00 : f32
    %28 = vector.broadcast %cst_11 : f32 to vector<128x8xf32>
    %29 = arith.addf %28, %27 : vector<128x8xf32>
    %30 = arith.divf %28, %29 : vector<128x8xf32>
    %31 = arith.mulf %25, %30 : vector<128x8xf32>
    %c0_12 = arith.constant 0 : index
    %c0_13 = arith.constant 0 : index
    %32 = vector.load %arg4[%c0_12, %c0_13] : memref<128x128xbf16, #tpu.memory_space<vmem>>, vector<128x128xbf16>
    %33 = arith.truncf %31 : vector<128x8xf32> to vector<128x8xbf16>
    %cst_14 = arith.constant dense<0.000000e+00> : vector<128x8xf32>
    %34 = tpu.matmul %32, %33, %cst_14 {dimension_numbers = #tpu.dot_dimension_numbers<[1], [0], [0], [1], [0, 0, 1, 1], [], []>} : vector<128x128xbf16>, vector<128x8xbf16>, vector<128x8xf32> -> vector<128x8xf32>
    %c0_15 = arith.constant 0 : index
    %c0_16 = arith.constant 0 : index
    %35 = vector.load %arg5[%c0_15, %c0_16] : memref<128x1xf32, #tpu.memory_space<vmem>>, vector<128x1xf32>
    %36 = vector.broadcast %35 : vector<128x1xf32> to vector<128x8xf32>
    %37 = arith.addf %34, %36 : vector<128x8xf32>
    %cst_17 = arith.constant dense<0.000000e+00> : vector<8xf32>
    %38 = vector.multi_reduction <add>, %37, %cst_17 [0] : vector<128x8xf32> to vector<8xf32>
    %39 = vector.shape_cast %38 : vector<8xf32> to vector<1x8xf32>
    %cst_18 = arith.constant 1.280000e+02 : f32
    %40 = vector.broadcast %cst_18 : f32 to vector<1x8xf32>
    %41 = arith.divf %39, %40 : vector<1x8xf32>
    %42 = arith.mulf %37, %37 : vector<128x8xf32>
    %cst_19 = arith.constant dense<0.000000e+00> : vector<8xf32>
    %43 = vector.multi_reduction <add>, %42, %cst_19 [0] : vector<128x8xf32> to vector<8xf32>
    %44 = vector.shape_cast %43 : vector<8xf32> to vector<1x8xf32>
    %cst_20 = arith.constant 1.280000e+02 : f32
    %45 = vector.broadcast %cst_20 : f32 to vector<1x8xf32>
    %46 = arith.divf %44, %45 : vector<1x8xf32>
    %47 = arith.mulf %41, %41 : vector<1x8xf32>
    %48 = arith.subf %46, %47 : vector<1x8xf32>
    %cst_21 = arith.constant 0.000000e+00 : f32
    %49 = vector.broadcast %cst_21 : f32 to vector<1x8xf32>
    %50 = arith.maximumf %48, %49 : vector<1x8xf32>
    %51 = vector.broadcast %41 : vector<1x8xf32> to vector<128x8xf32>
    %52 = arith.subf %37, %51 : vector<128x8xf32>
    %cst_22 = arith.constant 9.99999974E-6 : f32
    %53 = vector.broadcast %cst_22 : f32 to vector<1x8xf32>
    %54 = arith.addf %50, %53 : vector<1x8xf32>
    %55 = math.rsqrt %54 : vector<1x8xf32>
    %56 = vector.broadcast %55 : vector<1x8xf32> to vector<128x8xf32>
    %57 = arith.mulf %52, %56 : vector<128x8xf32>
    %58 = arith.negf %57 : vector<128x8xf32>
    %59 = math.exp %58 : vector<128x8xf32>
    %cst_23 = arith.constant 1.000000e+00 : f32
    %60 = vector.broadcast %cst_23 : f32 to vector<128x8xf32>
    %61 = arith.addf %60, %59 : vector<128x8xf32>
    %62 = arith.divf %60, %61 : vector<128x8xf32>
    %63 = arith.mulf %57, %62 : vector<128x8xf32>
    %c0_24 = arith.constant 0 : index
    %c0_25 = arith.constant 0 : index
    %64 = vector.load %arg6[%c0_24, %c0_25] : memref<128x1xf32, #tpu.memory_space<vmem>>, vector<128x1xf32>
    %65 = vector.broadcast %64 : vector<128x1xf32> to vector<128x8xf32>
    %66 = arith.mulf %63, %65 : vector<128x8xf32>
    %cst_26 = arith.constant dense<0.000000e+00> : vector<8xf32>
    %67 = vector.multi_reduction <add>, %66, %cst_26 [0] : vector<128x8xf32> to vector<8xf32>
    %68 = vector.shape_cast %67 : vector<8xf32> to vector<1x8xf32>
    %c0_27 = arith.constant 0 : index
    %c0_28 = arith.constant 0 : index
    %69 = memref.load %arg7[%c0_27, %c0_28] : memref<1x1xf32, #tpu.memory_space<smem>>
    %70 = vector.broadcast %69 : f32 to vector<1x8xf32>
    %71 = arith.addf %68, %70 : vector<1x8xf32>
    %c0_29 = arith.constant 0 : index
    %c0_30 = arith.constant 0 : index
    %72 = vector.load %arg8[%c0_29, %c0_30] : memref<1x8xf32, #tpu.memory_space<vmem>>, vector<1x8xf32>
    tpu.vector_store %arg8[%c0_29, %c0_30], %71 {strides = array<i32>} : memref<1x8xf32, #tpu.memory_space<vmem>>, vector<1x8xf32>,
    return
  }
  func.func @transform_0(%arg0: i32) -> (i32, i32) {
    %c0_i32 = arith.constant 0 : i32
    %c0_i32_0 = arith.constant 0 : i32
    return %c0_i32, %arg0 : i32, i32
  }
  func.func @transform_1(%arg0: i32) -> (i32, i32) {
    %c0_i32 = arith.constant 0 : i32
    %c0_i32_0 = arith.constant 0 : i32
    %c0_i32_1 = arith.constant 0 : i32
    return %c0_i32, %c0_i32_0 : i32, i32
  }
  func.func @transform_2(%arg0: i32) -> (i32, i32) {
    %c0_i32 = arith.constant 0 : i32
    %c0_i32_0 = arith.constant 0 : i32
    %c0_i32_1 = arith.constant 0 : i32
    return %c0_i32, %c0_i32_0 : i32, i32
  }
  func.func @transform_3(%arg0: i32) -> (i32, i32) {
    %c0_i32 = arith.constant 0 : i32
    %c0_i32_0 = arith.constant 0 : i32
    %c0_i32_1 = arith.constant 0 : i32
    return %c0_i32, %c0_i32_0 : i32, i32
  }
  func.func @transform_4(%arg0: i32) -> (i32, i32) {
    %c0_i32 = arith.constant 0 : i32
    %c0_i32_0 = arith.constant 0 : i32
    %c0_i32_1 = arith.constant 0 : i32
    return %c0_i32, %c0_i32_0 : i32, i32
  }
  func.func @transform_5(%arg0: i32) -> (i32, i32) {
    %c0_i32 = arith.constant 0 : i32
    %c0_i32_0 = arith.constant 0 : i32
    %c0_i32_1 = arith.constant 0 : i32
    return %c0_i32, %c0_i32_0 : i32, i32
  }
  func.func @transform_6(%arg0: i32) -> (i32, i32) {
    %c0_i32 = arith.constant 0 : i32
    %c0_i32_0 = arith.constant 0 : i32
    %c0_i32_1 = arith.constant 0 : i32
    return %c0_i32, %c0_i32_0 : i32, i32
  }
  func.func @transform_7(%arg0: i32) -> (i32, i32) {
    %c0_i32 = arith.constant 0 : i32
    %c0_i32_0 = arith.constant 0 : i32
    return %c0_i32, %arg0 : i32, i32
  }
}

</mosaic_0001>

<llo_original>
// kernel: reward_net_forward.1
$region0: #{reward_net_forward.1}
  #allocation0 [shape = 'u32[]', space=smem, size = 0x4, offset = 0x4, fixed_abs, tag = 'smem constant byte address 0x4 - core index']
  #allocation1 [shape = 'u32[144,128]{1,0:T(1,128)}', space=vmem, size = 0x12000, scoped, tag = 'internal scratch']
  #allocation2 [shape = 'f32[1,1]{1,0:T(1,128)S(6)}', space=smem, size = 0x200, scoped, tag = 'scoped memory for reward_net_forward.1']
  %s0 = inlined_call_operand.vmem [shape: bf16[8,8], index: 0, kind: input, shape index: {}]
  %s1 = inlined_call_operand.vmem [shape: bf16[128,8], index: 1, kind: input, shape index: {}]
  %s2 = inlined_call_operand.vmem [shape: f32[128,1], index: 2, kind: input, shape index: {}]
  %s3 = inlined_call_operand.vmem [shape: bf16[128,128], index: 3, kind: input, shape index: {}]
  %s4 = inlined_call_operand.vmem [shape: f32[128,1], index: 4, kind: input, shape index: {}]
  %s5 = inlined_call_operand.vmem [shape: f32[128,1], index: 5, kind: input, shape index: {}]
  %s6 = inlined_call_operand.<no memory space> [shape: f32[1,1], index: 6, kind: input, shape index: {}]
  %s7 = inlined_call_operand.hbm [shape: f32[1,8], index: 7, kind: output, shape index: {}]
  %s8 = sld [smem:[#allocation0]]
  $region38: #{reward_net_forward.1} parent=0
    _
  %s10 = ssub.s32 1, %s8
  %s11 = scalar_select 0, %s10, %s8
  %12 = sst [smem:[#allocation2]] %s6
  $region1: #{reward_net_forward.1} parent=0
    #allocation3 [shape = 'u8[512]{0}', space=vmem, size = 0x400, scoped, tag = 'output window, operand 0, single buffered']
    #allocation4 [shape = 's32[1]{0}', space=sflag, size = 0x4, scoped, tag = 'scoped memory for reward_net_forward.1']
    %13 = vsyncpa [#allocation4], 0
    // Predicated region
    $region2: #{reward_net_forward.1} parent=1 // pred_check
      _
    $region3: #{reward_net_forward.1} parent=1 // pred_check_branch
      %15 = sbr.rel (0) target = $region5
    $region4: #{reward_net_forward.1} parent=1 // pred_region
      _
    $region5: #{reward_net_forward.1} parent=1 // pred_fallthru
      _
    // Predicated region
    $region6: #{reward_net_forward.1} parent=1 // pred_check
      _
    $region7: #{reward_net_forward.1} parent=1 // pred_check_branch
      %17 = sbr.rel (0) target = $region9
    $region8: #{reward_net_forward.1} parent=1 // pred_region
      _
    $region9: #{reward_net_forward.1} parent=1 // pred_fallthru
      _
    // Predicated region
    $region10: #{reward_net_forward.1} parent=1 // pred_check
      _
    $region11: #{reward_net_forward.1} parent=1 // pred_check_branch
      %19 = sbr.rel (0) target = $region13
    $region12: #{reward_net_forward.1} parent=1 // pred_region
      _
    $region13: #{reward_net_forward.1} parent=1 // pred_fallthru
      _
    // Predicated region
    $region14: #{reward_net_forward.1} parent=1 // pred_check
      _
    $region15: #{reward_net_forward.1} parent=1 // pred_check_branch
      %21 = sbr.rel (0) target = $region17
    $region16: #{reward_net_forward.1} parent=1 // pred_region
      _
    $region17: #{reward_net_forward.1} parent=1 // pred_fallthru
      _
    // Predicated region
    $region18: #{reward_net_forward.1} parent=1 // pred_check
      _
    $region19: #{reward_net_forward.1} parent=1 // pred_check_branch
      %23 = sbr.rel (0) target = $region21
    $region20: #{reward_net_forward.1} parent=1 // pred_region
      _
    $region21: #{reward_net_forward.1} parent=1 // pred_fallthru
      _
    // Predicated region
    $region22: #{reward_net_forward.1} parent=1 // pred_check
      _
    $region23: #{reward_net_forward.1} parent=1 // pred_check_branch
      %25 = sbr.rel (0) target = $region25
    $region24: #{reward_net_forward.1} parent=1 // pred_region
      _
    $region25: #{reward_net_forward.1} parent=1 // pred_fallthru
      _
    // Predicated region
    $region26: #{reward_net_forward.1} parent=1 // pred_check
      _
    $region27: #{reward_net_forward.1} parent=1 // pred_check_branch
      %27 = sbr.rel (0) target = $region29
    $region28: #{reward_net_forward.1} parent=1 // pred_region
      _
    $region29: #{reward_net_forward.1} parent=1 // pred_fallthru
      _
    %v29 = vld [vmem:[%s1] sm:$0xf]
    %v30 = vld [vmem:[%s1 + $0x4] sm:$0xf]
    %v31 = vld [vmem:[%s1 + $0x8] sm:$0xf]
    %v32 = vld [vmem:[%s1 + $0xc] sm:$0xf]
    %v33 = vld [vmem:[%s1 + $0x10] sm:$0xf]
    %v34 = vld [vmem:[%s1 + $0x14] sm:$0xf]
    %v35 = vld [vmem:[%s1 + $0x18] sm:$0xf]
    %v36 = vld [vmem:[%s1 + $0x1c] sm:$0xf]
    %v37 = vld [vmem:[%s1 + $0x20] sm:$0xf]
    %v38 = vld [vmem:[%s1 + $0x24] sm:$0xf]
    %v39 = vld [vmem:[%s1 + $0x28] sm:$0xf]
    %v40 = vld [vmem:[%s1 + $0x2c] sm:$0xf]
    %v41 = vld [vmem:[%s1 + $0x30] sm:$0xf]
    %v42 = vld [vmem:[%s1 + $0x34] sm:$0xf]
    %v43 = vld [vmem:[%s1 + $0x38] sm:$0xf]
    %v44 = vld [vmem:[%s1 + $0x3c] sm:$0xf]
    %v45 = vld [vmem:[%s0] sm:$0xf]
    %v46 = vld [vmem:[%s2] sm:$0xff]
    %v47 = vld [vmem:[%s2 + $0x8] sm:$0xff]
    %v48 = vld [vmem:[%s2 + $0x10] sm:$0xff]
    %v49 = vld [vmem:[%s2 + $0x18] sm:$0xff]
    %v50 = vld [vmem:[%s2 + $0x20] sm:$0xff]
    %v51 = vld [vmem:[%s2 + $0x28] sm:$0xff]
    %v52 = vld [vmem:[%s2 + $0x30] sm:$0xff]
    %v53 = vld [vmem:[%s2 + $0x38] sm:$0xff]
    %v54 = vld [vmem:[%s2 + $0x40] sm:$0xff]
    %v55 = vld [vmem:[%s2 + $0x48] sm:$0xff]
    %v56 = vld [vmem:[%s2 + $0x50] sm:$0xff]
    %v57 = vld [vmem:[%s2 + $0x58] sm:$0xff]
    %v58 = vld [vmem:[%s2 + $0x60] sm:$0xff]
    %v59 = vld [vmem:[%s2 + $0x68] sm:$0xff]
    %v60 = vld [vmem:[%s2 + $0x70] sm:$0xff]
    %v61 = vld [vmem:[%s2 + $0x78] sm:$0xff]
    %63 = vset.pattern.permute.xlu0 0
    %64 = vperm.xlu0 %63, %v46
    %v65 = vpop.permute.xlu0 %64
    %68 = vset.pattern.permute.xlu0 0
    %69 = vperm.xlu0 %68, %v47
    %v70 = vpop.permute.xlu0 %69
    %73 = vset.pattern.permute.xlu0 0
    %74 = vperm.xlu0 %73, %v48
    %v75 = vpop.permute.xlu0 %74
    %78 = vset.pattern.permute.xlu0 0
    %79 = vperm.xlu0 %78, %v49
    %v80 = vpop.permute.xlu0 %79
    %83 = vset.pattern.permute.xlu0 0
    %84 = vperm.xlu0 %83, %v50
    %v85 = vpop.permute.xlu0 %84
    %88 = vset.pattern.permute.xlu0 0
    %89 = vperm.xlu0 %88, %v51
    %v90 = vpop.permute.xlu0 %89
    %93 = vset.pattern.permute.xlu0 0
    %94 = vperm.xlu0 %93, %v52
    %v95 = vpop.permute.xlu0 %94
    %98 = vset.pattern.permute.xlu0 0
    %99 = vperm.xlu0 %98, %v53
    %v100 = vpop.permute.xlu0 %99
    %103 = vset.pattern.permute.xlu0 0
    %104 = vperm.xlu0 %103, %v54
    %v105 = vpop.permute.xlu0 %104
    %108 = vset.pattern.permute.xlu0 0
    %109 = vperm.xlu0 %108, %v55
    %v110 = vpop.permute.xlu0 %109
    %113 = vset.pattern.permute.xlu0 0
    %114 = vperm.xlu0 %113, %v56
    %v115 = vpop.permute.xlu0 %114
    %118 = vset.pattern.permute.xlu0 0
    %119 = vperm.xlu0 %118, %v57
    %v120 = vpop.permute.xlu0 %119
    %123 = vset.pattern.permute.xlu0 0
    %124 = vperm.xlu0 %123, %v58
    %v125 = vpop.permute.xlu0 %124
    %128 = vset.pattern.permute.xlu0 0
    %129 = vperm.xlu0 %128, %v59
    %v130 = vpop.permute.xlu0 %129
    %133 = vset.pattern.permute.xlu0 0
    %134 = vperm.xlu0 %133, %v60
    %v135 = vpop.permute.xlu0 %134
    %138 = vset.pattern.permute.xlu0 0
    %139 = vperm.xlu0 %138, %v61
    %v140 = vpop.permute.xlu0 %139
    %v158 = vunpack.c.l.b16 %v29
    %v159 = vunpack.c.l.b16 %v30
    %v160 = vunpack.c.l.b16 %v31
    %v161 = vunpack.c.l.b16 %v32
    %v162 = vunpack.c.l.b16 %v33
    %v163 = vunpack.c.l.b16 %v34
    %v164 = vunpack.c.l.b16 %v35
    %v165 = vunpack.c.l.b16 %v36
    %v166 = vunpack.c.l.b16 %v37
    %v167 = vunpack.c.l.b16 %v38
    %v168 = vunpack.c.l.b16 %v39
    %v169 = vunpack.c.l.b16 %v40
    %v170 = vunpack.c.l.b16 %v41
    %v171 = vunpack.c.l.b16 %v42
    %v172 = vunpack.c.l.b16 %v43
    %v173 = vunpack.c.l.b16 %v44
    %v174 = vpack.c.b16 %v159, %v158
    %v175 = vpack.c.b16 %v161, %v160
    %v176 = vpack.c.b16 %v163, %v162
    %v177 = vpack.c.b16 %v165, %v164
    %v178 = vpack.c.b16 %v167, %v166
    %v179 = vpack.c.b16 %v169, %v168
    %v180 = vpack.c.b16 %v171, %v170
    %v181 = vpack.c.b16 %v173, %v172
    %vm182 = vcmask 64512
    %v184 = vsel %vm182, %v174, 0
    %v187 = vsel %vm182, %v175, 0
    %v190 = vsel %vm182, %v176, 0
    %v193 = vsel %vm182, %v177, 0
    %v196 = vsel %vm182, %v178, 0
    %v199 = vsel %vm182, %v179, 0
    %v202 = vsel %vm182, %v180, 0
    %v205 = vsel %vm182, %v181, 0
    %vm207 = vcmask 1043456
    %v209 = vsel %vm207, %v45, 0
    %211 = vmatprep.subr.bf16.mxu0 0
    %212 = vmatpush1.bf16.msra.mxu0 0
    %213 = vmatprep.subr.bf16.mxu0 0
    %214 = vmatpush1.bf16.msra.mxu0 0
    %215 = vmatprep.subr.bf16.mxu0 0
    %216 = vmatpush1.bf16.msra.mxu0 0
    %217 = vmatprep.subr.bf16.mxu0 0
    %218 = vmatpush1.bf16.msra.mxu0 0
    %219 = vmatprep.subr.bf16.mxu0 0
    %220 = vmatpush1.bf16.msra.mxu0 0
    %221 = vmatprep.subr.bf16.mxu0 0
    %222 = vmatpush1.bf16.msra.mxu0 0
    %223 = vmatprep.subr.bf16.mxu0 0
    %224 = vmatpush1.bf16.msra.mxu0 0
    %225 = vmatprep.subr.bf16.mxu0 0
    %226 = vmatpush1.bf16.msra.mxu0 %v209
    %227 = vmatprep.subr.bf16.mxu0 0
    %228 = vmatpush2.bf16.msra.mxu0 0
    %229 = vmatprep.subr.bf16.mxu0 0
    %230 = vmatpush2.bf16.msra.mxu0 0
    %231 = vmatprep.subr.bf16.mxu0 0
    %232 = vmatpush2.bf16.msra.mxu0 0
    %233 = vmatprep.subr.bf16.mxu0 0
    %234 = vmatpush2.bf16.msra.mxu0 0
    %235 = vmatprep.subr.bf16.mxu0 0
    %236 = vmatpush2.bf16.msra.mxu0 0
    %237 = vmatprep.subr.bf16.mxu0 0
    %238 = vmatpush2.bf16.msra.mxu0 0
    %239 = vmatprep.subr.bf16.mxu0 0
    %240 = vmatpush2.bf16.msra.mxu0 0
    %241 = vmatprep.subr.bf16.mxu0 0
    %242 = vmatpush2.bf16.msra.mxu0 0
    %243 = vmatprep.mubr.bf16.mxu0 0
    %244 = vmatmul.mubr.bf16.gmra.mxu0 %v184
    %v245 = vpop.f32.mrf.mxu0
    %v246 = vadd.f32 %v65, %v245
    %v247 = vpop.f32.mrf.mxu0
    %v248 = vpop.f32.mrf.mxu0
    %v249 = vadd.f32 %v70, %v248
    %v250 = vpop.f32.mrf.mxu0
    %251 = vmatprep.mubr.bf16.mxu0 0
    %252 = vmatmul.mubr.bf16.gmra.mxu0 %v187
    %v253 = vpop.f32.mrf.mxu0
    %v254 = vadd.f32 %v75, %v253
    %v255 = vpop.f32.mrf.mxu0
    %v256 = vpop.f32.mrf.mxu0
    %v257 = vadd.f32 %v80, %v256
    %v258 = vpop.f32.mrf.mxu0
    %259 = vmatprep.mubr.bf16.mxu0 0
    %260 = vmatmul.mubr.bf16.gmra.mxu0 %v190
    %v261 = vpop.f32.mrf.mxu0
    %v262 = vadd.f32 %v85, %v261
    %v263 = vpop.f32.mrf.mxu0
    %v264 = vpop.f32.mrf.mxu0
    %v265 = vadd.f32 %v90, %v264
    %v266 = vpop.f32.mrf.mxu0
    %267 = vmatprep.mubr.bf16.mxu0 0
    %268 = vmatmul.mubr.bf16.gmra.mxu0 %v193
    %v269 = vpop.f32.mrf.mxu0
    %v270 = vadd.f32 %v95, %v269
    %v271 = vpop.f32.mrf.mxu0
    %v272 = vpop.f32.mrf.mxu0
    %v273 = vadd.f32 %v100, %v272
    %v274 = vpop.f32.mrf.mxu0
    %275 = vmatprep.mubr.bf16.mxu0 0
    %276 = vmatmul.mubr.bf16.gmra.mxu0 %v196
    %v277 = vpop.f32.mrf.mxu0
    %v278 = vadd.f32 %v105, %v277
    %v279 = vpop.f32.mrf.mxu0
    %v280 = vpop.f32.mrf.mxu0
    %v281 = vadd.f32 %v110, %v280
    %v282 = vpop.f32.mrf.mxu0
    %283 = vmatprep.mubr.bf16.mxu0 0
    %284 = vmatmul.mubr.bf16.gmra.mxu0 %v199
    %v285 = vpop.f32.mrf.mxu0
    %v286 = vadd.f32 %v115, %v285
    %v287 = vpop.f32.mrf.mxu0
    %v288 = vpop.f32.mrf.mxu0
    %v289 = vadd.f32 %v120, %v288
    %v290 = vpop.f32.mrf.mxu0
    %291 = vmatprep.mubr.bf16.mxu0 0
    %292 = vmatmul.mubr.bf16.gmra.mxu0 %v202
    %v293 = vpop.f32.mrf.mxu0
    %v294 = vadd.f32 %v125, %v293
    %v295 = vpop.f32.mrf.mxu0
    %v296 = vpop.f32.mrf.mxu0
    %v297 = vadd.f32 %v130, %v296
    %v298 = vpop.f32.mrf.mxu0
    %299 = vmatprep.mubr.bf16.mxu0 0
    %300 = vmatmul.mubr.bf16.gmra.mxu0 %v205
    %v301 = vpop.f32.mrf.mxu0
    %v302 = vadd.f32 %v135, %v301
    %v303 = vpop.f32.mrf.mxu0
    %v304 = vpop.f32.mrf.mxu0
    %v305 = vadd.f32 %v140, %v304
    %v306 = vpop.f32.mrf.mxu0
    %307 = vdwg.mxu0
    %v308 = vsel %vm182, %v246, 0.0
    %v309 = vsel %vm182, %v249, 0.0
    %v310 = vadd.f32 %v308, %v309
    %v311 = vsel %vm182, %v254, 0.0
    %v312 = vadd.f32 %v310, %v311
    %v313 = vsel %vm182, %v257, 0.0
    %v314 = vadd.f32 %v312, %v313
    %v315 = vsel %vm182, %v262, 0.0
    %v316 = vadd.f32 %v314, %v315
    %v317 = vsel %vm182, %v265, 0.0
    %v318 = vadd.f32 %v316, %v317
    %v319 = vsel %vm182, %v270, 0.0
    %v320 = vadd.f32 %v318, %v319
    %v321 = vsel %vm182, %v273, 0.0
    %v322 = vadd.f32 %v320, %v321
    %v323 = vsel %vm182, %v278, 0.0
    %v324 = vadd.f32 %v322, %v323
    %v325 = vsel %vm182, %v281, 0.0
    %v326 = vadd.f32 %v324, %v325
    %v327 = vsel %vm182, %v286, 0.0
    %v328 = vadd.f32 %v326, %v327
    %v329 = vsel %vm182, %v289, 0.0
    %v330 = vadd.f32 %v328, %v329
    %v331 = vsel %vm182, %v294, 0.0
    %v332 = vadd.f32 %v330, %v331
    %v333 = vsel %vm182, %v297, 0.0
    %v334 = vadd.f32 %v332, %v333
    %v335 = vsel %vm182, %v302, 0.0
    %v336 = vadd.f32 %v334, %v335
    %v337 = vsel %vm182, %v305, 0.0
    %v338 = vadd.f32 %v336, %v337
    %v339 = vrot.slane %v338, 4
    %v340 = vadd.f32 %v338, %v339
    %v341 = vrot.slane %v340, 2
    %v342 = vadd.f32 %v340, %v341
    %v343 = vrot.slane %v342, 1
    %v344 = vadd.f32 %v342, %v343
    %v345 = vrcp.pop 128.0
    %v346 = vmul.f32 %v344, %v345
    %v347 = vmul.f32 %v246, %v246
    %v348 = vmul.f32 %v249, %v249
    %v349 = vmul.f32 %v254, %v254
    %v350 = vmul.f32 %v257, %v257
    %v351 = vmul.f32 %v262, %v262
    %v352 = vmul.f32 %v265, %v265
    %v353 = vmul.f32 %v270, %v270
    %v354 = vmul.f32 %v273, %v273
    %v355 = vmul.f32 %v278, %v278
    %v356 = vmul.f32 %v281, %v281
    %v357 = vmul.f32 %v286, %v286
    %v358 = vmul.f32 %v289, %v289
    %v359 = vmul.f32 %v294, %v294
    %v360 = vmul.f32 %v297, %v297
    %v361 = vmul.f32 %v302, %v302
    %v362 = vmul.f32 %v305, %v305
    %v363 = vsel %vm182, %v347, 0.0
    %v364 = vsel %vm182, %v348, 0.0
    %v365 = vadd.f32 %v363, %v364
    %v366 = vsel %vm182, %v349, 0.0
    %v367 = vadd.f32 %v365, %v366
    %v368 = vsel %vm182, %v350, 0.0
    %v369 = vadd.f32 %v367, %v368
    %v370 = vsel %vm182, %v351, 0.0
    %v371 = vadd.f32 %v369, %v370
    %v372 = vsel %vm182, %v352, 0.0
    %v373 = vadd.f32 %v371, %v372
    %v374 = vsel %vm182, %v353, 0.0
    %v375 = vadd.f32 %v373, %v374
    %v376 = vsel %vm182, %v354, 0.0
    %v377 = vadd.f32 %v375, %v376
    %v378 = vsel %vm182, %v355, 0.0
    %v379 = vadd.f32 %v377, %v378
    %v380 = vsel %vm182, %v356, 0.0
    %v381 = vadd.f32 %v379, %v380
    %v382 = vsel %vm182, %v357, 0.0
    %v383 = vadd.f32 %v381, %v382
    %v384 = vsel %vm182, %v358, 0.0
    %v385 = vadd.f32 %v383, %v384
    %v386 = vsel %vm182, %v359, 0.0
    %v387 = vadd.f32 %v385, %v386
    %v388 = vsel %vm182, %v360, 0.0
    %v389 = vadd.f32 %v387, %v388
    %v390 = vsel %vm182, %v361, 0.0
    %v391 = vadd.f32 %v389, %v390
    %v392 = vsel %vm182, %v362, 0.0
    %v393 = vadd.f32 %v391, %v392
    %v394 = vrot.slane %v393, 4
    %v395 = vadd.f32 %v393, %v394
    %v396 = vrot.slane %v395, 2
    %v397 = vadd.f32 %v395, %v396
    %v398 = vrot.slane %v397, 1
    %v399 = vadd.f32 %v397, %v398
    %v400 = vmul.f32 %v399, %v345
    %v401 = vmul.f32 %v346, %v346
    %v402 = vsub.f32 %v400, %v401
    %v403 = vmax.f32 %v402, 0.0
    %v404 = vsub.f32 %v246, %v346
    %v405 = vsub.f32 %v249, %v346
    %v406 = vsub.f32 %v254, %v346
    %v407 = vsub.f32 %v257, %v346
    %v408 = vsub.f32 %v262, %v346
    %v409 = vsub.f32 %v265, %v346
    %v410 = vsub.f32 %v270, %v346
    %v411 = vsub.f32 %v273, %v346
    %v412 = vsub.f32 %v278, %v346
    %v413 = vsub.f32 %v281, %v346
    %v414 = vsub.f32 %v286, %v346
    %v415 = vsub.f32 %v289, %v346
    %v416 = vsub.f32 %v294, %v346
    %v417 = vsub.f32 %v297, %v346
    %v418 = vsub.f32 %v302, %v346
    %v419 = vsub.f32 %v305, %v346
    %v420 = vadd.f32 %v403, 1e-05
    %v421 = vrsqrt.pop %v420
    %v422 = vmul.f32 %v404, %v421
    %v423 = vmul.f32 %v405, %v421
    %v424 = vmul.f32 %v406, %v421
    %v425 = vmul.f32 %v407, %v421
    %v426 = vmul.f32 %v408, %v421
    %v427 = vmul.f32 %v409, %v421
    %v428 = vmul.f32 %v410, %v421
    %v429 = vmul.f32 %v411, %v421
    %v430 = vmul.f32 %v412, %v421
    %v431 = vmul.f32 %v413, %v421
    %v432 = vmul.f32 %v414, %v421
    %v433 = vmul.f32 %v415, %v421
    %v434 = vmul.f32 %v416, %v421
    %v435 = vmul.f32 %v417, %v421
    %v436 = vmul.f32 %v418, %v421
    %v437 = vmul.f32 %v419, %v421
    %v438 = vxor.u32 %v422, 2147483648
    %v439 = vxor.u32 %v423, 2147483648
    %v440 = vxor.u32 %v424, 2147483648
    %v441 = vxor.u32 %v425, 2147483648
    %v442 = vxor.u32 %v426, 2147483648
    %v443 = vxor.u32 %v427, 2147483648
    %v444 = vxor.u32 %v428, 2147483648
    %v445 = vxor.u32 %v429, 2147483648
    %v446 = vxor.u32 %v430, 2147483648
    %v447 = vxor.u32 %v431, 2147483648
    %v448 = vxor.u32 %v432, 2147483648
    %v449 = vxor.u32 %v433, 2147483648
    %v450 = vxor.u32 %v434, 2147483648
    %v451 = vxor.u32 %v435, 2147483648
    %v452 = vxor.u32 %v436, 2147483648
    %v453 = vxor.u32 %v437, 2147483648
    %v454 = vmul.f32 %v438, 1.442695
    %v455 = vpow.pop %v454
    %v456 = vmul.f32 %v439, 1.442695
    %v457 = vpow.pop %v456
    %v458 = vmul.f32 %v440, 1.442695
    %v459 = vpow.pop %v458
    %v460 = vmul.f32 %v441, 1.442695
    %v461 = vpow.pop %v460
    %v462 = vmul.f32 %v442, 1.442695
    %v463 = vpow.pop %v462
    %v464 = vmul.f32 %v443, 1.442695
    %v465 = vpow.pop %v464
    %v466 = vmul.f32 %v444, 1.442695
    %v467 = vpow.pop %v466
    %v468 = vmul.f32 %v445, 1.442695
    %v469 = vpow.pop %v468
    %v470 = vmul.f32 %v446, 1.442695
    %v471 = vpow.pop %v470
    %v472 = vmul.f32 %v447, 1.442695
    %v473 = vpow.pop %v472
    %v474 = vmul.f32 %v448, 1.442695
    %v475 = vpow.pop %v474
    %v476 = vmul.f32 %v449, 1.442695
    %v477 = vpow.pop %v476
    %v478 = vmul.f32 %v450, 1.442695
    %v479 = vpow.pop %v478
    %v480 = vmul.f32 %v451, 1.442695
    %v481 = vpow.pop %v480
    %v482 = vmul.f32 %v452, 1.442695
    %v483 = vpow.pop %v482
    %v484 = vmul.f32 %v453, 1.442695
    %v485 = vpow.pop %v484
    %v486 = vadd.f32 %v455, 1.0
    %v487 = vadd.f32 %v457, 1.0
    %v488 = vadd.f32 %v459, 1.0
    %v489 = vadd.f32 %v461, 1.0
    %v490 = vadd.f32 %v463, 1.0
    %v491 = vadd.f32 %v465, 1.0
    %v492 = vadd.f32 %v467, 1.0
    %v493 = vadd.f32 %v469, 1.0
    %v494 = vadd.f32 %v471, 1.0
    %v495 = vadd.f32 %v473, 1.0
    %v496 = vadd.f32 %v475, 1.0
    %v497 = vadd.f32 %v477, 1.0
    %v498 = vadd.f32 %v479, 1.0
    %v499 = vadd.f32 %v481, 1.0
    %v500 = vadd.f32 %v483, 1.0
    %v501 = vadd.f32 %v485, 1.0
    %v502 = vrcp.pop %v486
    %v503 = vmul.f32 1.0, %v502
    %v504 = vrcp.pop %v487
    %v505 = vmul.f32 1.0, %v504
    %v506 = vrcp.pop %v488
    %v507 = vmul.f32 1.0, %v506
    %v508 = vrcp.pop %v489
    %v509 = vmul.f32 1.0, %v508
    %v510 = vrcp.pop %v490
    %v511 = vmul.f32 1.0, %v510
    %v512 = vrcp.pop %v491
    %v513 = vmul.f32 1.0, %v512
    %v514 = vrcp.pop %v492
    %v515 = vmul.f32 1.0, %v514
    %v516 = vrcp.pop %v493
    %v517 = vmul.f32 1.0, %v516
    %v518 = vrcp.pop %v494
    %v519 = vmul.f32 1.0, %v518
    %v520 = vrcp.pop %v495
    %v521 = vmul.f32 1.0, %v520
    %v522 = vrcp.pop %v496
    %v523 = vmul.f32 1.0, %v522
    %v524 = vrcp.pop %v497
    %v525 = vmul.f32 1.0, %v524
    %v526 = vrcp.pop %v498
    %v527 = vmul.f32 1.0, %v526
    %v528 = vrcp.pop %v499
    %v529 = vmul.f32 1.0, %v528
    %v530 = vrcp.pop %v500
    %v531 = vmul.f32 1.0, %v530
    %v532 = vrcp.pop %v501
    %v533 = vmul.f32 1.0, %v532
    %v534 = vmul.f32 %v422, %v503
    %v535 = vmul.f32 %v423, %v505
    %v536 = vmul.f32 %v424, %v507
    %v537 = vmul.f32 %v425, %v509
    %v538 = vmul.f32 %v426, %v511
    %v539 = vmul.f32 %v427, %v513
    %v540 = vmul.f32 %v428, %v515
    %v541 = vmul.f32 %v429, %v517
    %v542 = vmul.f32 %v430, %v519
    %v543 = vmul.f32 %v431, %v521
    %v544 = vmul.f32 %v432, %v523
    %v545 = vmul.f32 %v433, %v525
    %v546 = vmul.f32 %v434, %v527
    %v547 = vmul.f32 %v435, %v529
    %v548 = vmul.f32 %v436, %v531
    %v549 = vmul.f32 %v437, %v533
    %v550 = vld [vmem:[%s3] sm:$0xf]
    %v551 = vld [vmem:[%s3 + $0x4] sm:$0xf]
    %v552 = vld [vmem:[%s3 + $0x8] sm:$0xf]
    %v553 = vld [vmem:[%s3 + $0xc] sm:$0xf]
    %v554 = vld [vmem:[%s3 + $0x10] sm:$0xf]
    %v555 = vld [vmem:[%s3 + $0x14] sm:$0xf]
    %v556 = vld [vmem:[%s3 + $0x18] sm:$0xf]
    %v557 = vld [vmem:[%s3 + $0x1c] sm:$0xf]
    %v558 = vld [vmem:[%s3 + $0x20] sm:$0xf]
    %v559 = vld [vmem:[%s3 + $0x24] sm:$0xf]
    %v560 = vld [vmem:[%s3 + $0x28] sm:$0xf]
    %v561 = vld [vmem:[%s3 + $0x2c] sm:$0xf]
    %v562 = vld [vmem:[%s3 + $0x30] sm:$0xf]
    %v563 = vld [vmem:[%s3 + $0x34] sm:$0xf]
    %v564 = vld [vmem:[%s3 + $0x38] sm:$0xf]
    %v565 = vld [vmem:[%s3 + $0x3c] sm:$0xf]
    %v566 = vpack.c.bf16 %v535, %v534
    %v567 = vpack.c.bf16 %v537, %v536
    %v568 = vpack.c.bf16 %v539, %v538
    %v569 = vpack.c.bf16 %v541, %v540
    %v570 = vpack.c.bf16 %v543, %v542
    %v571 = vpack.c.bf16 %v545, %v544
    %v572 = vpack.c.bf16 %v547, %v546
    %v573 = vpack.c.bf16 %v549, %v548
    %v574 = vld [vmem:[%s4] sm:$0xff]
    %v575 = vld [vmem:[%s4 + $0x8] sm:$0xff]
    %v576 = vld [vmem:[%s4 + $0x10] sm:$0xff]
    %v577 = vld [vmem:[%s4 + $0x18] sm:$0xff]
    %v578 = vld [vmem:[%s4 + $0x20] sm:$0xff]
    %v579 = vld [vmem:[%s4 + $0x28] sm:$0xff]
    %v580 = vld [vmem:[%s4 + $0x30] sm:$0xff]
    %v581 = vld [vmem:[%s4 + $0x38] sm:$0xff]
    %v582 = vld [vmem:[%s4 + $0x40] sm:$0xff]
    %v583 = vld [vmem:[%s4 + $0x48] sm:$0xff]
    %v584 = vld [vmem:[%s4 + $0x50] sm:$0xff]
    %v585 = vld [vmem:[%s4 + $0x58] sm:$0xff]
    %v586 = vld [vmem:[%s4 + $0x60] sm:$0xff]
    %v587 = vld [vmem:[%s4 + $0x68] sm:$0xff]
    %v588 = vld [vmem:[%s4 + $0x70] sm:$0xff]
    %v589 = vld [vmem:[%s4 + $0x78] sm:$0xff]
    %591 = vset.pattern.permute.xlu0 0
    %592 = vperm.xlu0 %591, %v574
    %v593 = vpop.permute.xlu0 %592
    %596 = vset.pattern.permute.xlu0 0
    %597 = vperm.xlu0 %596, %v575
    %v598 = vpop.permute.xlu0 %597
    %601 = vset.pattern.permute.xlu0 0
    %602 = vperm.xlu0 %601, %v576
    %v603 = vpop.permute.xlu0 %602
    %606 = vset.pattern.permute.xlu0 0
    %607 = vperm.xlu0 %606, %v577
    %v608 = vpop.permute.xlu0 %607
    %611 = vset.pattern.permute.xlu0 0
    %612 = vperm.xlu0 %611, %v578
    %v613 = vpop.permute.xlu0 %612
    %616 = vset.pattern.permute.xlu0 0
    %617 = vperm.xlu0 %616, %v579
    %v618 = vpop.permute.xlu0 %617
    %621 = vset.pattern.permute.xlu0 0
    %622 = vperm.xlu0 %621, %v580
    %v623 = vpop.permute.xlu0 %622
    %626 = vset.pattern.permute.xlu0 0
    %627 = vperm.xlu0 %626, %v581
    %v628 = vpop.permute.xlu0 %627
    %631 = vset.pattern.permute.xlu0 0
    %632 = vperm.xlu0 %631, %v582
    %v633 = vpop.permute.xlu0 %632
    %636 = vset.pattern.permute.xlu0 0
    %637 = vperm.xlu0 %636, %v583
    %v638 = vpop.permute.xlu0 %637
    %641 = vset.pattern.permute.xlu0 0
    %642 = vperm.xlu0 %641, %v584
    %v643 = vpop.permute.xlu0 %642
    %646 = vset.pattern.permute.xlu0 0
    %647 = vperm.xlu0 %646, %v585
    %v648 = vpop.permute.xlu0 %647
    %651 = vset.pattern.permute.xlu0 0
    %652 = vperm.xlu0 %651, %v586
    %v653 = vpop.permute.xlu0 %652
    %656 = vset.pattern.permute.xlu0 0
    %657 = vperm.xlu0 %656, %v587
    %v658 = vpop.permute.xlu0 %657
    %661 = vset.pattern.permute.xlu0 0
    %662 = vperm.xlu0 %661, %v588
    %v663 = vpop.permute.xlu0 %662
    %666 = vset.pattern.permute.xlu0 0
    %667 = vperm.xlu0 %666, %v589
    %v668 = vpop.permute.xlu0 %667
    %v686 = vunpack.c.l.b16 %v550
    %v687 = vunpack.c.l.b16 %v551
    %v688 = vunpack.c.l.b16 %v552
    %v689 = vunpack.c.l.b16 %v553
    %v690 = vunpack.c.l.b16 %v554
    %v691 = vunpack.c.l.b16 %v555
    %v692 = vunpack.c.l.b16 %v556
    %v693 = vunpack.c.l.b16 %v557
    %v694 = vunpack.c.l.b16 %v558
    %v695 = vunpack.c.l.b16 %v559
    %v696 = vunpack.c.l.b16 %v560
    %v697 = vunpack.c.l.b16 %v561
    %v698 = vunpack.c.l.b16 %v562
    %v699 = vunpack.c.l.b16 %v563
    %v700 = vunpack.c.l.b16 %v564
    %v701 = vunpack.c.l.b16 %v565
    %v702 = vpack.c.b16 %v687, %v686
    %v703 = vpack.c.b16 %v689, %v688
    %v704 = vpack.c.b16 %v691, %v690
    %v705 = vpack.c.b16 %v693, %v692
    %v706 = vpack.c.b16 %v695, %v694
    %v707 = vpack.c.b16 %v697, %v696
    %v708 = vpack.c.b16 %v699, %v698
    %v709 = vpack.c.b16 %v701, %v700
    %718 = vmatprep.subr.bf16.mxu0 0
    %719 = vmatpush1.bf16.msra.mxu0 %v573
    %720 = vmatprep.subr.bf16.mxu0 0
    %721 = vmatpush1.bf16.msra.mxu0 %v572
    %722 = vmatprep.subr.bf16.mxu0 0
    %723 = vmatpush1.bf16.msra.mxu0 %v571
    %724 = vmatprep.subr.bf16.mxu0 0
    %725 = vmatpush1.bf16.msra.mxu0 %v570
    %726 = vmatprep.subr.bf16.mxu0 0
    %727 = vmatpush1.bf16.msra.mxu0 %v569
    %728 = vmatprep.subr.bf16.mxu0 0
    %729 = vmatpush1.bf16.msra.mxu0 %v568
    %730 = vmatprep.subr.bf16.mxu0 0
    %731 = vmatpush1.bf16.msra.mxu0 %v567
    %732 = vmatprep.subr.bf16.mxu0 0
    %733 = vmatpush1.bf16.msra.mxu0 %v566
    %734 = vmatprep.subr.bf16.mxu0 0
    %735 = vmatpush2.bf16.msra.mxu0 0
    %736 = vmatprep.subr.bf16.mxu0 0
    %737 = vmatpush2.bf16.msra.mxu0 0
    %738 = vmatprep.subr.bf16.mxu0 0
    %739 = vmatpush2.bf16.msra.mxu0 0
    %740 = vmatprep.subr.bf16.mxu0 0
    %741 = vmatpush2.bf16.msra.mxu0 0
    %742 = vmatprep.subr.bf16.mxu0 0
    %743 = vmatpush2.bf16.msra.mxu0 0
    %744 = vmatprep.subr.bf16.mxu0 0
    %745 = vmatpush2.bf16.msra.mxu0 0
    %746 = vmatprep.subr.bf16.mxu0 0
    %747 = vmatpush2.bf16.msra.mxu0 0
    %748 = vmatprep.subr.bf16.mxu0 0
    %749 = vmatpush2.bf16.msra.mxu0 0
    %750 = vmatprep.mubr.bf16.mxu0 0
    %751 = vmatmul.mubr.bf16.gmra.mxu0 %v702
    %v752 = vpop.f32.mrf.mxu0
    %v753 = vadd.f32 %v593, %v752
    %v754 = vpop.f32.mrf.mxu0
    %v755 = vpop.f32.mrf.mxu0
    %v756 = vadd.f32 %v598, %v755
    %v757 = vpop.f32.mrf.mxu0
    %758 = vmatprep.mubr.bf16.mxu0 0
    %759 = vmatmul.mubr.bf16.gmra.mxu0 %v703
    %v760 = vpop.f32.mrf.mxu0
    %v761 = vadd.f32 %v603, %v760
    %v762 = vpop.f32.mrf.mxu0
    %v763 = vpop.f32.mrf.mxu0
    %v764 = vadd.f32 %v608, %v763
    %v765 = vpop.f32.mrf.mxu0
    %766 = vmatprep.mubr.bf16.mxu0 0
    %767 = vmatmul.mubr.bf16.gmra.mxu0 %v704
    %v768 = vpop.f32.mrf.mxu0
    %v769 = vadd.f32 %v613, %v768
    %v770 = vpop.f32.mrf.mxu0
    %v771 = vpop.f32.mrf.mxu0
    %v772 = vadd.f32 %v618, %v771
    %v773 = vpop.f32.mrf.mxu0
    %774 = vmatprep.mubr.bf16.mxu0 0
    %775 = vmatmul.mubr.bf16.gmra.mxu0 %v705
    %v776 = vpop.f32.mrf.mxu0
    %v777 = vadd.f32 %v623, %v776
    %v778 = vpop.f32.mrf.mxu0
    %v779 = vpop.f32.mrf.mxu0
    %v780 = vadd.f32 %v628, %v779
    %v781 = vpop.f32.mrf.mxu0
    %782 = vmatprep.mubr.bf16.mxu0 0
    %783 = vmatmul.mubr.bf16.gmra.mxu0 %v706
    %v784 = vpop.f32.mrf.mxu0
    %v785 = vadd.f32 %v633, %v784
    %v786 = vpop.f32.mrf.mxu0
    %v787 = vpop.f32.mrf.mxu0
    %v788 = vadd.f32 %v638, %v787
    %v789 = vpop.f32.mrf.mxu0
    %790 = vmatprep.mubr.bf16.mxu0 0
    %791 = vmatmul.mubr.bf16.gmra.mxu0 %v707
    %v792 = vpop.f32.mrf.mxu0
    %v793 = vadd.f32 %v643, %v792
    %v794 = vpop.f32.mrf.mxu0
    %v795 = vpop.f32.mrf.mxu0
    %v796 = vadd.f32 %v648, %v795
    %v797 = vpop.f32.mrf.mxu0
    %798 = vmatprep.mubr.bf16.mxu0 0
    %799 = vmatmul.mubr.bf16.gmra.mxu0 %v708
    %v800 = vpop.f32.mrf.mxu0
    %v801 = vadd.f32 %v653, %v800
    %v802 = vpop.f32.mrf.mxu0
    %v803 = vpop.f32.mrf.mxu0
    %v804 = vadd.f32 %v658, %v803
    %v805 = vpop.f32.mrf.mxu0
    %806 = vmatprep.mubr.bf16.mxu0 0
    %807 = vmatmul.mubr.bf16.gmra.mxu0 %v709
    %v808 = vpop.f32.mrf.mxu0
    %v809 = vadd.f32 %v663, %v808
    %v810 = vpop.f32.mrf.mxu0
    %v811 = vpop.f32.mrf.mxu0
    %v812 = vadd.f32 %v668, %v811
    %v813 = vpop.f32.mrf.mxu0
    %814 = vdwg.mxu0
    %v815 = vsel %vm182, %v753, 0.0
    %v816 = vsel %vm182, %v756, 0.0
    %v817 = vadd.f32 %v815, %v816
    %v818 = vsel %vm182, %v761, 0.0
    %v819 = vadd.f32 %v817, %v818
    %v820 = vsel %vm182, %v764, 0.0
    %v821 = vadd.f32 %v819, %v820
    %v822 = vsel %vm182, %v769, 0.0
    %v823 = vadd.f32 %v821, %v822
    %v824 = vsel %vm182, %v772, 0.0
    %v825 = vadd.f32 %v823, %v824
    %v826 = vsel %vm182, %v777, 0.0
    %v827 = vadd.f32 %v825, %v826
    %v828 = vsel %vm182, %v780, 0.0
    %v829 = vadd.f32 %v827, %v828
    %v830 = vsel %vm182, %v785, 0.0
    %v831 = vadd.f32 %v829, %v830
    %v832 = vsel %vm182, %v788, 0.0
    %v833 = vadd.f32 %v831, %v832
    %v834 = vsel %vm182, %v793, 0.0
    %v835 = vadd.f32 %v833, %v834
    %v836 = vsel %vm182, %v796, 0.0
    %v837 = vadd.f32 %v835, %v836
    %v838 = vsel %vm182, %v801, 0.0
    %v839 = vadd.f32 %v837, %v838
    %v840 = vsel %vm182, %v804, 0.0
    %v841 = vadd.f32 %v839, %v840
    %v842 = vsel %vm182, %v809, 0.0
    %v843 = vadd.f32 %v841, %v842
    %v844 = vsel %vm182, %v812, 0.0
    %v845 = vadd.f32 %v843, %v844
    %v846 = vrot.slane %v845, 4
    %v847 = vadd.f32 %v845, %v846
    %v848 = vrot.slane %v847, 2
    %v849 = vadd.f32 %v847, %v848
    %v850 = vrot.slane %v849, 1
    %v851 = vadd.f32 %v849, %v850
    %v852 = vmul.f32 %v851, %v345
    %v853 = vmul.f32 %v753, %v753
    %v854 = vmul.f32 %v756, %v756
    %v855 = vmul.f32 %v761, %v761
    %v856 = vmul.f32 %v764, %v764
    %v857 = vmul.f32 %v769, %v769
    %v858 = vmul.f32 %v772, %v772
    %v859 = vmul.f32 %v777, %v777
    %v860 = vmul.f32 %v780, %v780
    %v861 = vmul.f32 %v785, %v785
    %v862 = vmul.f32 %v788, %v788
    %v863 = vmul.f32 %v793, %v793
    %v864 = vmul.f32 %v796, %v796
    %v865 = vmul.f32 %v801, %v801
    %v866 = vmul.f32 %v804, %v804
    %v867 = vmul.f32 %v809, %v809
    %v868 = vmul.f32 %v812, %v812
    %v869 = vsel %vm182, %v853, 0.0
    %v870 = vsel %vm182, %v854, 0.0
    %v871 = vadd.f32 %v869, %v870
    %v872 = vsel %vm182, %v855, 0.0
    %v873 = vadd.f32 %v871, %v872
    %v874 = vsel %vm182, %v856, 0.0
    %v875 = vadd.f32 %v873, %v874
    %v876 = vsel %vm182, %v857, 0.0
    %v877 = vadd.f32 %v875, %v876
    %v878 = vsel %vm182, %v858, 0.0
    %v879 = vadd.f32 %v877, %v878
    %v880 = vsel %vm182, %v859, 0.0
    %v881 = vadd.f32 %v879, %v880
    %v882 = vsel %vm182, %v860, 0.0
    %v883 = vadd.f32 %v881, %v882
    %v884 = vsel %vm182, %v861, 0.0
    %v885 = vadd.f32 %v883, %v884
    %v886 = vsel %vm182, %v862, 0.0
    %v887 = vadd.f32 %v885, %v886
    %v888 = vsel %vm182, %v863, 0.0
    %v889 = vadd.f32 %v887, %v888
    %v890 = vsel %vm182, %v864, 0.0
    %v891 = vadd.f32 %v889, %v890
    %v892 = vsel %vm182, %v865, 0.0
    %v893 = vadd.f32 %v891, %v892
    %v894 = vsel %vm182, %v866, 0.0
    %v895 = vadd.f32 %v893, %v894
    %v896 = vsel %vm182, %v867, 0.0
    %v897 = vadd.f32 %v895, %v896
    %v898 = vsel %vm182, %v868, 0.0
    %v899 = vadd.f32 %v897, %v898
    %v900 = vrot.slane %v899, 4
    %v901 = vadd.f32 %v899, %v900
    %v902 = vrot.slane %v901, 2
    %v903 = vadd.f32 %v901, %v902
    %v904 = vrot.slane %v903, 1
    %v905 = vadd.f32 %v903, %v904
    %v906 = vmul.f32 %v905, %v345
    %v907 = vmul.f32 %v852, %v852
    %v908 = vsub.f32 %v906, %v907
    %v909 = vmax.f32 %v908, 0.0
    %v910 = vsub.f32 %v753, %v852
    %v911 = vsub.f32 %v756, %v852
    %v912 = vsub.f32 %v761, %v852
    %v913 = vsub.f32 %v764, %v852
    %v914 = vsub.f32 %v769, %v852
    %v915 = vsub.f32 %v772, %v852
    %v916 = vsub.f32 %v777, %v852
    %v917 = vsub.f32 %v780, %v852
    %v918 = vsub.f32 %v785, %v852
    %v919 = vsub.f32 %v788, %v852
    %v920 = vsub.f32 %v793, %v852
    %v921 = vsub.f32 %v796, %v852
    %v922 = vsub.f32 %v801, %v852
    %v923 = vsub.f32 %v804, %v852
    %v924 = vsub.f32 %v809, %v852
    %v925 = vsub.f32 %v812, %v852
    %v926 = vadd.f32 %v909, 1e-05
    %v927 = vrsqrt.pop %v926
    %v928 = vmul.f32 %v910, %v927
    %v929 = vmul.f32 %v911, %v927
    %v930 = vmul.f32 %v912, %v927
    %v931 = vmul.f32 %v913, %v927
    %v932 = vmul.f32 %v914, %v927
    %v933 = vmul.f32 %v915, %v927
    %v934 = vmul.f32 %v916, %v927
    %v935 = vmul.f32 %v917, %v927
    %v936 = vmul.f32 %v918, %v927
    %v937 = vmul.f32 %v919, %v927
    %v938 = vmul.f32 %v920, %v927
    %v939 = vmul.f32 %v921, %v927
    %v940 = vmul.f32 %v922, %v927
    %v941 = vmul.f32 %v923, %v927
    %v942 = vmul.f32 %v924, %v927
    %v943 = vmul.f32 %v925, %v927
    %v944 = vxor.u32 %v928, 2147483648
    %v945 = vxor.u32 %v929, 2147483648
    %v946 = vxor.u32 %v930, 2147483648
    %v947 = vxor.u32 %v931, 2147483648
    %v948 = vxor.u32 %v932, 2147483648
    %v949 = vxor.u32 %v933, 2147483648
    %v950 = vxor.u32 %v934, 2147483648
    %v951 = vxor.u32 %v935, 2147483648
    %v952 = vxor.u32 %v936, 2147483648
    %v953 = vxor.u32 %v937, 2147483648
    %v954 = vxor.u32 %v938, 2147483648
    %v955 = vxor.u32 %v939, 2147483648
    %v956 = vxor.u32 %v940, 2147483648
    %v957 = vxor.u32 %v941, 2147483648
    %v958 = vxor.u32 %v942, 2147483648
    %v959 = vxor.u32 %v943, 2147483648
    %v960 = vmul.f32 %v944, 1.442695
    %v961 = vpow.pop %v960
    %v962 = vmul.f32 %v945, 1.442695
    %v963 = vpow.pop %v962
    %v964 = vmul.f32 %v946, 1.442695
    %v965 = vpow.pop %v964
    %v966 = vmul.f32 %v947, 1.442695
    %v967 = vpow.pop %v966
    %v968 = vmul.f32 %v948, 1.442695
    %v969 = vpow.pop %v968
    %v970 = vmul.f32 %v949, 1.442695
    %v971 = vpow.pop %v970
    %v972 = vmul.f32 %v950, 1.442695
    %v973 = vpow.pop %v972
    %v974 = vmul.f32 %v951, 1.442695
    %v975 = vpow.pop %v974
    %v976 = vmul.f32 %v952, 1.442695
    %v977 = vpow.pop %v976
    %v978 = vmul.f32 %v953, 1.442695
    %v979 = vpow.pop %v978
    %v980 = vmul.f32 %v954, 1.442695
    %v981 = vpow.pop %v980
    %v982 = vmul.f32 %v955, 1.442695
    %v983 = vpow.pop %v982
    %v984 = vmul.f32 %v956, 1.442695
    %v985 = vpow.pop %v984
    %v986 = vmul.f32 %v957, 1.442695
    %v987 = vpow.pop %v986
    %v988 = vmul.f32 %v958, 1.442695
    %v989 = vpow.pop %v988
    %v990 = vmul.f32 %v959, 1.442695
    %v991 = vpow.pop %v990
    %v992 = vadd.f32 %v961, 1.0
    %v993 = vadd.f32 %v963, 1.0
    %v994 = vadd.f32 %v965, 1.0
    %v995 = vadd.f32 %v967, 1.0
    %v996 = vadd.f32 %v969, 1.0
    %v997 = vadd.f32 %v971, 1.0
    %v998 = vadd.f32 %v973, 1.0
    %v999 = vadd.f32 %v975, 1.0
    %v1000 = vadd.f32 %v977, 1.0
    %v1001 = vadd.f32 %v979, 1.0
    %v1002 = vadd.f32 %v981, 1.0
    %v1003 = vadd.f32 %v983, 1.0
    %v1004 = vadd.f32 %v985, 1.0
    %v1005 = vadd.f32 %v987, 1.0
    %v1006 = vadd.f32 %v989, 1.0
    %v1007 = vadd.f32 %v991, 1.0
    %v1008 = vrcp.pop %v992
    %v1009 = vmul.f32 1.0, %v1008
    %v1010 = vrcp.pop %v993
    %v1011 = vmul.f32 1.0, %v1010
    %v1012 = vrcp.pop %v994
    %v1013 = vmul.f32 1.0, %v1012
    %v1014 = vrcp.pop %v995
    %v1015 = vmul.f32 1.0, %v1014
    %v1016 = vrcp.pop %v996
    %v1017 = vmul.f32 1.0, %v1016
    %v1018 = vrcp.pop %v997
    %v1019 = vmul.f32 1.0, %v1018
    %v1020 = vrcp.pop %v998
    %v1021 = vmul.f32 1.0, %v1020
    %v1022 = vrcp.pop %v999
    %v1023 = vmul.f32 1.0, %v1022
    %v1024 = vrcp.pop %v1000
    %v1025 = vmul.f32 1.0, %v1024
    %v1026 = vrcp.pop %v1001
    %v1027 = vmul.f32 1.0, %v1026
    %v1028 = vrcp.pop %v1002
    %v1029 = vmul.f32 1.0, %v1028
    %v1030 = vrcp.pop %v1003
    %v1031 = vmul.f32 1.0, %v1030
    %v1032 = vrcp.pop %v1004
    %v1033 = vmul.f32 1.0, %v1032
    %v1034 = vrcp.pop %v1005
    %v1035 = vmul.f32 1.0, %v1034
    %v1036 = vrcp.pop %v1006
    %v1037 = vmul.f32 1.0, %v1036
    %v1038 = vrcp.pop %v1007
    %v1039 = vmul.f32 1.0, %v1038
    %v1040 = vmul.f32 %v928, %v1009
    %v1041 = vmul.f32 %v929, %v1011
    %v1042 = vmul.f32 %v930, %v1013
    %v1043 = vmul.f32 %v931, %v1015
    %v1044 = vmul.f32 %v932, %v1017
    %v1045 = vmul.f32 %v933, %v1019
    %v1046 = vmul.f32 %v934, %v1021
    %v1047 = vmul.f32 %v935, %v1023
    %v1048 = vmul.f32 %v936, %v1025
    %v1049 = vmul.f32 %v937, %v1027
    %v1050 = vmul.f32 %v938, %v1029
    %v1051 = vmul.f32 %v939, %v1031
    %v1052 = vmul.f32 %v940, %v1033
    %v1053 = vmul.f32 %v941, %v1035
    %v1054 = vmul.f32 %v942, %v1037
    %v1055 = vmul.f32 %v943, %v1039
    %v1056 = vld [vmem:[%s5] sm:$0xff]
    %v1057 = vld [vmem:[%s5 + $0x8] sm:$0xff]
    %v1058 = vld [vmem:[%s5 + $0x10] sm:$0xff]
    %v1059 = vld [vmem:[%s5 + $0x18] sm:$0xff]
    %v1060 = vld [vmem:[%s5 + $0x20] sm:$0xff]
    %v1061 = vld [vmem:[%s5 + $0x28] sm:$0xff]
    %v1062 = vld [vmem:[%s5 + $0x30] sm:$0xff]
    %v1063 = vld [vmem:[%s5 + $0x38] sm:$0xff]
    %v1064 = vld [vmem:[%s5 + $0x40] sm:$0xff]
    %v1065 = vld [vmem:[%s5 + $0x48] sm:$0xff]
    %v1066 = vld [vmem:[%s5 + $0x50] sm:$0xff]
    %v1067 = vld [vmem:[%s5 + $0x58] sm:$0xff]
    %v1068 = vld [vmem:[%s5 + $0x60] sm:$0xff]
    %v1069 = vld [vmem:[%s5 + $0x68] sm:$0xff]
    %v1070 = vld [vmem:[%s5 + $0x70] sm:$0xff]
    %v1071 = vld [vmem:[%s5 + $0x78] sm:$0xff]
    %1073 = vset.pattern.permute.xlu0 0
    %1074 = vperm.xlu0 %1073, %v1056
    %v1075 = vpop.permute.xlu0 %1074
    %1078 = vset.pattern.permute.xlu0 0
    %1079 = vperm.xlu0 %1078, %v1057
    %v1080 = vpop.permute.xlu0 %1079
    %1083 = vset.pattern.permute.xlu0 0
    %1084 = vperm.xlu0 %1083, %v1058
    %v1085 = vpop.permute.xlu0 %1084
    %1088 = vset.pattern.permute.xlu0 0
    %1089 = vperm.xlu0 %1088, %v1059
    %v1090 = vpop.permute.xlu0 %1089
    %1093 = vset.pattern.permute.xlu0 0
    %1094 = vperm.xlu0 %1093, %v1060
    %v1095 = vpop.permute.xlu0 %1094
    %1098 = vset.pattern.permute.xlu0 0
    %1099 = vperm.xlu0 %1098, %v1061
    %v1100 = vpop.permute.xlu0 %1099
    %1103 = vset.pattern.permute.xlu0 0
    %1104 = vperm.xlu0 %1103, %v1062
    %v1105 = vpop.permute.xlu0 %1104
    %1108 = vset.pattern.permute.xlu0 0
    %1109 = vperm.xlu0 %1108, %v1063
    %v1110 = vpop.permute.xlu0 %1109
    %1113 = vset.pattern.permute.xlu0 0
    %1114 = vperm.xlu0 %1113, %v1064
    %v1115 = vpop.permute.xlu0 %1114
    %1118 = vset.pattern.permute.xlu0 0
    %1119 = vperm.xlu0 %1118, %v1065
    %v1120 = vpop.permute.xlu0 %1119
    %1123 = vset.pattern.permute.xlu0 0
    %1124 = vperm.xlu0 %1123, %v1066
    %v1125 = vpop.permute.xlu0 %1124
    %1128 = vset.pattern.permute.xlu0 0
    %1129 = vperm.xlu0 %1128, %v1067
    %v1130 = vpop.permute.xlu0 %1129
    %1133 = vset.pattern.permute.xlu0 0
    %1134 = vperm.xlu0 %1133, %v1068
    %v1135 = vpop.permute.xlu0 %1134
    %1138 = vset.pattern.permute.xlu0 0
    %1139 = vperm.xlu0 %1138, %v1069
    %v1140 = vpop.permute.xlu0 %1139
    %1143 = vset.pattern.permute.xlu0 0
    %1144 = vperm.xlu0 %1143, %v1070
    %v1145 = vpop.permute.xlu0 %1144
    %1148 = vset.pattern.permute.xlu0 0
    %1149 = vperm.xlu0 %1148, %v1071
    %v1150 = vpop.permute.xlu0 %1149
    %v1152 = vmul.f32 %v1040, %v1075
    %v1153 = vmul.f32 %v1041, %v1080
    %v1154 = vmul.f32 %v1042, %v1085
    %v1155 = vmul.f32 %v1043, %v1090
    %v1156 = vmul.f32 %v1044, %v1095
    %v1157 = vmul.f32 %v1045, %v1100
    %v1158 = vmul.f32 %v1046, %v1105
    %v1159 = vmul.f32 %v1047, %v1110
    %v1160 = vmul.f32 %v1048, %v1115
    %v1161 = vmul.f32 %v1049, %v1120
    %v1162 = vmul.f32 %v1050, %v1125
    %v1163 = vmul.f32 %v1051, %v1130
    %v1164 = vmul.f32 %v1052, %v1135
    %v1165 = vmul.f32 %v1053, %v1140
    %v1166 = vmul.f32 %v1054, %v1145
    %v1167 = vmul.f32 %v1055, %v1150
    %v1168 = vsel %vm182, %v1152, 0.0
    %v1169 = vsel %vm182, %v1153, 0.0
    %v1170 = vadd.f32 %v1168, %v1169
    %v1171 = vsel %vm182, %v1154, 0.0
    %v1172 = vadd.f32 %v1170, %v1171
    %v1173 = vsel %vm182, %v1155, 0.0
    %v1174 = vadd.f32 %v1172, %v1173
    %v1175 = vsel %vm182, %v1156, 0.0
    %v1176 = vadd.f32 %v1174, %v1175
    %v1177 = vsel %vm182, %v1157, 0.0
    %v1178 = vadd.f32 %v1176, %v1177
    %v1179 = vsel %vm182, %v1158, 0.0
    %v1180 = vadd.f32 %v1178, %v1179
    %v1181 = vsel %vm182, %v1159, 0.0
    %v1182 = vadd.f32 %v1180, %v1181
    %v1183 = vsel %vm182, %v1160, 0.0
    %v1184 = vadd.f32 %v1182, %v1183
    %v1185 = vsel %vm182, %v1161, 0.0
    %v1186 = vadd.f32 %v1184, %v1185
    %v1187 = vsel %vm182, %v1162, 0.0
    %v1188 = vadd.f32 %v1186, %v1187
    %v1189 = vsel %vm182, %v1163, 0.0
    %v1190 = vadd.f32 %v1188, %v1189
    %v1191 = vsel %vm182, %v1164, 0.0
    %v1192 = vadd.f32 %v1190, %v1191
    %v1193 = vsel %vm182, %v1165, 0.0
    %v1194 = vadd.f32 %v1192, %v1193
    %v1195 = vsel %vm182, %v1166, 0.0
    %v1196 = vadd.f32 %v1194, %v1195
    %v1197 = vsel %vm182, %v1167, 0.0
    %v1198 = vadd.f32 %v1196, %v1197
    %v1199 = vrot.slane %v1198, 4
    %v1200 = vadd.f32 %v1198, %v1199
    %v1201 = vrot.slane %v1200, 2
    %v1202 = vadd.f32 %v1200, %v1201
    %v1203 = vrot.slane %v1202, 1
    %v1204 = vadd.f32 %v1202, %v1203
    %s1205 = sld [smem:[#allocation2]]
    %v1206 = vstv %s1205
    %v1207 = vadd.f32 %v1204, %v1206
    %vm1208 = vcmask 57344
    %1209 = vst.msk [vmem:[#allocation3] sm:$0x1] %vm1208, %v1207
    // Predicated region
    $region30: #{reward_net_forward.1} parent=1 // pred_check
      _
    $region31: #{reward_net_forward.1} parent=1 // pred_check_branch
      %1211 = sbr.rel (0) target = $region33
    $region32: #{reward_net_forward.1} parent=1 // pred_region
      %s1213 = ssub.s32 16, 16
      %1214 = vsyncadd [#allocation4], %s1213
      %s1216 = sshll.u32 [#allocation3], 4
      %s1217 = int_to_ptr.vmem [resolvable:$true] %s1216
      %1219 = dma.vmem_to_hbm [thread:$0]  %s1217, 16, %s7, [#allocation4]
    $region33: #{reward_net_forward.1} parent=1 // pred_fallthru
      _
    // Predicated region
    $region34: #{reward_net_forward.1} parent=1 // pred_check
      _
    $region35: #{reward_net_forward.1} parent=1 // pred_check_branch
      %1221 = sbr.rel (0) target = $region37
    $region36: #{reward_net_forward.1} parent=1 // pred_region
      %1222 = dma.done [#allocation4], 16
    $region37: #{reward_net_forward.1} parent=1 // pred_fallthru
      _
    %1223 = vsyncpa [#allocation4], 1

</llo_original>
